<compile_context>
chip_gen: v7x
topology: tpu7x:2x2x1
jax: 0.10.0
libtpu: 0.0.40
codegen_flags: <defaults>
</compile_context>

<pallas_src>
import jax
import jax.numpy as jnp
from jax import lax
from jax.experimental import pallas as pl
from jax.experimental.pallas import tpu as pltpu


def _gemm_bn_relu_kernel(x_ref, w_ref, scale_ref, bias_ref, o_ref):
    """One (batch, spatial-tile) grid step.

    x_ref:     (1, K, TSP)   bf16  im2col slab (K = k*k*Cin, TSP spatial tile)
    w_ref:     (Cout, K)     bf16  reshaped conv weight
    scale_ref: (Cout, 1)     f32   folded BN scale
    bias_ref:  (Cout, 1)     f32   folded BN / conv bias
    o_ref:     (1, Cout, TSP)      output tile (NCHW layout, spatial on lanes)
    """
    # Single MXU GEMM, f32 accumulation.
    y = jnp.dot(w_ref[...], x_ref[0],
                preferred_element_type=jnp.float32)       # (Cout, TSP) f32
    # Fused BatchNorm (eval) + ReLU epilogue in f32 (broadcast along lanes).
    y = y * scale_ref[...] + bias_ref[...]
    y = jnp.maximum(y, 0.0)
    o_ref[...] = y[None].astype(o_ref.dtype)


def atrous_conv_forward(x_nchw, weight_hwio, conv_bias, gamma, beta,
                        running_mean, running_var, *,
                        pad, dilation, eps=1e-5, out_dtype=jnp.float32):
    """AtrousConv forward. x_nchw: (N, Cin, H, W) -> (N, Cout, H_out, W_out)."""
    n, c_in, h, w = x_nchw.shape
    k = weight_hwio.shape[0]
    c_out = weight_hwio.shape[-1]
    h_out = h + 2 * pad - dilation * (k - 1)
    w_out = w + 2 * pad - dilation * (k - 1)
    m_sp = h_out * w_out
    kk = k * k * c_in

    # --- plain-XLA glue on the (tiny) input: pad + im2col, NCHW kept. ------
    x_pad = jnp.pad(x_nchw, ((0, 0), (0, 0), (pad, pad), (pad, pad)))
    taps = []
    for kh in range(k):
        for kw in range(k):
            taps.append(x_pad[:, :,
                              kh * dilation:kh * dilation + h_out,
                              kw * dilation:kw * dilation + w_out])
    # (N, k*k, Cin, H_out, W_out) -> (N, K, H_out*W_out); K order = (kh,kw,cin)
    col = jnp.stack(taps, axis=1).reshape(n, kk, m_sp)

    # Pad spatial axis to a multiple of 128 so kernel stores are lane-dense
    # (unmasked vst) regardless of image size.
    m_pad = ((m_sp + 127) // 128) * 128
    if m_pad != m_sp:
        col = jnp.pad(col, ((0, 0), (0, 0), (0, m_pad - m_sp)))
    col = col.astype(jnp.bfloat16)

    # Weight HWIO (kh,kw,Cin,Cout) -> (Cout, K) with matching K order.
    w2d = jnp.transpose(weight_hwio, (3, 0, 1, 2)).reshape(c_out, kk)
    w2d = w2d.astype(jnp.bfloat16)

    # Fold eval-mode BN + conv bias into per-channel scale / bias (f32).
    scale = (gamma / jnp.sqrt(running_var + eps)).astype(jnp.float32)
    bias = (beta + (conv_bias - running_mean) * scale).astype(jnp.float32)
    scale2d = scale.reshape(c_out, 1)
    bias2d = bias.reshape(c_out, 1)

    # Spatial tile: largest of {2048,...,128} dividing the padded spatial dim.
    tsp = 128
    for cand in (2048, 1024, 512, 256, 128):
        if m_pad % cand == 0:
            tsp = cand
            break

    out = pl.pallas_call(
        _gemm_bn_relu_kernel,
        out_shape=jax.ShapeDtypeStruct((n, c_out, m_pad), out_dtype),
        grid_spec=pltpu.PrefetchScalarGridSpec(
            num_scalar_prefetch=0,
            grid=(n, m_pad // tsp),
            in_specs=[
                pl.BlockSpec((1, kk, tsp), lambda b, s: (b, 0, s)),
                pl.BlockSpec((c_out, kk), lambda b, s: (0, 0)),
                pl.BlockSpec((c_out, 1), lambda b, s: (0, 0)),
                pl.BlockSpec((c_out, 1), lambda b, s: (0, 0)),
            ],
            out_specs=pl.BlockSpec((1, c_out, tsp), lambda b, s: (b, 0, s)),
        ),
        compiler_params=pltpu.CompilerParams(
            dimension_semantics=("parallel", "parallel")),
    )(col, w2d, scale2d, bias2d)

    # Drop spatial padding (if any), then metadata reshape to NCHW.
    if m_pad != m_sp:
        out = out[:, :, :m_sp]
    return out.reshape(n, c_out, h_out, w_out)


def _reference(x_nchw, weight_hwio, conv_bias, gamma, beta,
               running_mean, running_var, *, pad, dilation, eps=1e-5):
    y = lax.conv_general_dilated(
        x_nchw, weight_hwio,
        window_strides=(1, 1),
        padding=[(pad, pad), (pad, pad)],
        rhs_dilation=(dilation, dilation),
        dimension_numbers=("NCHW", "HWIO", "NCHW"))
    y = y + conv_bias.reshape(1, -1, 1, 1)
    y = ((y - running_mean.reshape(1, -1, 1, 1))
         / jnp.sqrt(running_var.reshape(1, -1, 1, 1) + eps)
         * gamma.reshape(1, -1, 1, 1) + beta.reshape(1, -1, 1, 1))
    return jnp.maximum(y, 0.0)


if __name__ == "__main__":
    # Module config: AtrousConv(input_channels=4, kernel_size=3, pad=2,
    #                           dilation=2, output_channels=256)
    N, C_IN, H, W = 2, 4, 16, 16
    C_OUT, K, PAD, DIL = 256, 3, 2, 2

    key = jax.random.PRNGKey(0)
    kx, kw, kb, kg, kbt, km, kv = jax.random.split(key, 7)

    x = jax.random.normal(kx, (N, C_IN, H, W), jnp.float32)
    weight = jax.random.normal(kw, (K, K, C_IN, C_OUT), jnp.float32) * 0.1
    conv_bias = jax.random.normal(kb, (C_OUT,), jnp.float32) * 0.1
    gamma = 1.0 + 0.1 * jax.random.normal(kg, (C_OUT,), jnp.float32)
    beta = 0.1 * jax.random.normal(kbt, (C_OUT,), jnp.float32)
    running_mean = 0.1 * jax.random.normal(km, (C_OUT,), jnp.float32)
    running_var = 1.0 + 0.1 * jax.random.uniform(kv, (C_OUT,), jnp.float32)

    out = atrous_conv_forward(x, weight, conv_bias, gamma, beta,
                              running_mean, running_var,
                              pad=PAD, dilation=DIL)
    out = jax.block_until_ready(out)

    ref = _reference(x, weight, conv_bias, gamma, beta,
                     running_mean, running_var, pad=PAD, dilation=DIL)
    assert out.shape == (N, C_OUT, H, W), out.shape
    # bf16 MXU operands vs f32 reference -> loosened tolerance.
    assert jnp.allclose(out, ref, atol=2e-2, rtol=2e-2), \
        float(jnp.max(jnp.abs(out - ref)))

    print("KERNEL_OK")
</pallas_src>

<mosaic_0001>
module attributes {stable_mosaic.version = 11 : i64} {
  func.func @_gemm_bn_relu_kernel(%arg0: i32, %arg1: i32, %arg2: memref<1x36x256xbf16, #tpu.memory_space<vmem>>, %arg3: memref<256x36xbf16, #tpu.memory_space<vmem>>, %arg4: memref<256x1xf32, #tpu.memory_space<vmem>>, %arg5: memref<256x1xf32, #tpu.memory_space<vmem>>, %arg6: memref<1x256x256xf32, #tpu.memory_space<vmem>>) attributes {dimension_semantics = [#tpu.dimension_semantics<parallel>, #tpu.dimension_semantics<parallel>], iteration_bounds = array<i64: 2, 1>, scalar_prefetch = 0 : i64, scratch_operands = 0 : i64, tpu.core_type = #tpu.core_type<tc>, window_params = [{transform_indices = @transform_0, window_bounds = array<i64: 1, 36, 256>}, {pipeline_mode = #tpu.pipeline_mode<synchronous>, transform_indices = @transform_1, window_bounds = array<i64: 256, 36>}, {pipeline_mode = #tpu.pipeline_mode<synchronous>, transform_indices = @transform_2, window_bounds = array<i64: 256, 1>}, {pipeline_mode = #tpu.pipeline_mode<synchronous>, transform_indices = @transform_3, window_bounds = array<i64: 256, 1>}, {transform_indices = @transform_4, window_bounds = array<i64: 1, 256, 256>}]} {
    %c0 = arith.constant 0 : index
    %c0_0 = arith.constant 0 : index
    %0 = vector.load %arg3[%c0, %c0_0] : memref<256x36xbf16, #tpu.memory_space<vmem>>, vector<256x36xbf16>
    %c0_1 = arith.constant 0 : index
    %c0_2 = arith.constant 0 : index
    %c0_3 = arith.constant 0 : index
    %1 = vector.load %arg2[%c0_1, %c0_2, %c0_3] : memref<1x36x256xbf16, #tpu.memory_space<vmem>>, vector<1x36x256xbf16>
    %2 = vector.shape_cast %1 : vector<1x36x256xbf16> to vector<36x256xbf16>
    %cst = arith.constant dense<0.000000e+00> : vector<256x256xf32>
    %3 = tpu.matmul %0, %2, %cst {dimension_numbers = #tpu.dot_dimension_numbers<[1], [0], [0], [1], [0, 0, 1, 1], [], []>} : vector<256x36xbf16>, vector<36x256xbf16>, vector<256x256xf32> -> vector<256x256xf32>
    %c0_4 = arith.constant 0 : index
    %c0_5 = arith.constant 0 : index
    %4 = vector.load %arg4[%c0_4, %c0_5] : memref<256x1xf32, #tpu.memory_space<vmem>>, vector<256x1xf32>
    %5 = vector.broadcast %4 : vector<256x1xf32> to vector<256x256xf32>
    %6 = arith.mulf %3, %5 : vector<256x256xf32>
    %c0_6 = arith.constant 0 : index
    %c0_7 = arith.constant 0 : index
    %7 = vector.load %arg5[%c0_6, %c0_7] : memref<256x1xf32, #tpu.memory_space<vmem>>, vector<256x1xf32>
    %8 = vector.broadcast %7 : vector<256x1xf32> to vector<256x256xf32>
    %9 = arith.addf %6, %8 : vector<256x256xf32>
    %cst_8 = arith.constant 0.000000e+00 : f32
    %10 = vector.broadcast %cst_8 : f32 to vector<256x256xf32>
    %11 = arith.maximumf %9, %10 : vector<256x256xf32>
    %12 = vector.shape_cast %11 : vector<256x256xf32> to vector<1x256x256xf32>
    %c0_9 = arith.constant 0 : index
    %c0_10 = arith.constant 0 : index
    %c0_11 = arith.constant 0 : index
    %13 = vector.load %arg6[%c0_9, %c0_10, %c0_11] : memref<1x256x256xf32, #tpu.memory_space<vmem>>, vector<1x256x256xf32>
    tpu.vector_store %arg6[%c0_9, %c0_10, %c0_11], %12 {strides = array<i32>} : memref<1x256x256xf32, #tpu.memory_space<vmem>>, vector<1x256x256xf32>,
    return
  }
  func.func @transform_0(%arg0: i32, %arg1: i32) -> (i32, i32, i32) {
    %c0_i32 = arith.constant 0 : i32
    %c0_i32_0 = arith.constant 0 : i32
    return %arg0, %c0_i32, %arg1 : i32, i32, i32
  }
  func.func @transform_1(%arg0: i32, %arg1: i32) -> (i32, i32) {
    %c0_i32 = arith.constant 0 : i32
    %c0_i32_0 = arith.constant 0 : i32
    %c0_i32_1 = arith.constant 0 : i32
    return %c0_i32, %c0_i32_0 : i32, i32
  }
  func.func @transform_2(%arg0: i32, %arg1: i32) -> (i32, i32) {
    %c0_i32 = arith.constant 0 : i32
    %c0_i32_0 = arith.constant 0 : i32
    %c0_i32_1 = arith.constant 0 : i32
    return %c0_i32, %c0_i32_0 : i32, i32
  }
  func.func @transform_3(%arg0: i32, %arg1: i32) -> (i32, i32) {
    %c0_i32 = arith.constant 0 : i32
    %c0_i32_0 = arith.constant 0 : i32
    %c0_i32_1 = arith.constant 0 : i32
    return %c0_i32, %c0_i32_0 : i32, i32
  }
  func.func @transform_4(%arg0: i32, %arg1: i32) -> (i32, i32, i32) {
    %c0_i32 = arith.constant 0 : i32
    %c0_i32_0 = arith.constant 0 : i32
    return %arg0, %c0_i32, %arg1 : i32, i32, i32
  }
}

</mosaic_0001>

<llo_original>
// kernel: tpu_custom_call.1
$region0: #{tpu_custom_call.1}
  #allocation0 [shape = 'u32[]', space=smem, size = 0x4, offset = 0x4, fixed_abs, tag = 'smem constant byte address 0x4 - core index']
  #allocation1 [shape = 'u32[144,128]{1,0:T(1,128)}', space=vmem, size = 0x12000, scoped, tag = 'internal scratch']
  %s0 = inlined_call_operand.vmem [shape: bf16[2,36,256], index: 0, kind: input, shape index: {}]
  %s1 = inlined_call_operand.vmem [shape: bf16[256,36], index: 1, kind: input, shape index: {}]
  %s2 = inlined_call_operand.vmem [shape: f32[256,1], index: 2, kind: input, shape index: {}]
  %s3 = inlined_call_operand.vmem [shape: f32[256,1], index: 3, kind: input, shape index: {}]
  %s4 = inlined_call_operand.hbm [shape: f32[2,256,256], index: 4, kind: output, shape index: {}]
  %s5 = sld [smem:[#allocation0]]
  $region49: #{tpu_custom_call.1} parent=0
    _
  %s7 = ssub.s32 1, %s5
  %s8 = scalar_select 0, %s7, %s5
  $region1: #{tpu_custom_call.1} parent=0
    #allocation2 [shape = 'u8[524288]{0}', space=vmem, size = 0x80000, scoped, tag = 'output window, operand 0']
    #allocation3 [shape = 's32[2]{0}', space=sflag, size = 0x8, scoped, tag = 'scoped memory for tpu_custom_call.1']
    %9 = vsyncpa [#allocation3], 0
    %s10 = scalar_lea.sflag [#allocation3], 1
    %11 = vsyncpa %s10, 0
    loop: start=0, step=1, limit=4
    $region2: #{tpu_custom_call.1} parent=1 // loop_pre_header
      _
    $region3: #{tpu_custom_call.1} parent=1 // loop_header
      %s13 = sphi 0, %s17
      %p14 = scmp.ge.s32.totalorder %s13, 4
      %s20 = sphi 0, %s32
      %s21 = sphi 0, %s28
      %s22 = sphi 0, %s20
      %s23 = sphi 0, %s21
      %s24 = sphi 0, %s22
      %s25 = sphi 0, %s23
      %s37 = sphi 0, %s39
      %s40 = sphi 0, %s37
      %s41 = sphi 0, %s40
      %s57 = sphi 0, %s41
      %s61 = sphi 0, %s61
      %s63 = sphi 0, %s61
      %s64 = sphi 0, %s63
      %s78 = sphi 0, %s64
      %s82 = sphi 0, %s82
      %s84 = sphi 0, %s82
      %s85 = sphi 0, %s84
      %s99 = sphi 0, %s85
      %s103 = sphi 0, %s103
      %s105 = sphi 0, %s103
      %s106 = sphi 0, %s105
      %s120 = sphi 0, %s106
      %s128 = sphi 0, %s130
      %s131 = sphi 0, %s128
      %s132 = sphi 0, %s131
      %s148 = sphi 0, %s132
    $region4: #{tpu_custom_call.1} parent=1 // loop_header_branch
      %16 = sbr.rel (%p14) target = $region8
    $region5: #{tpu_custom_call.1} parent=1 // loop_body
      %s18 = ssub.s32 %s13, 1
      %s19 = ssub.s32 %s13, 2
      %s26 = sadd.s32 1, %s21
      %p27 = scmp.ge.s32.totalorder %s26, 1
      %s28 = scalar_select %p27, 0, %s26
      %s29 = sadd.s32 1, %s20
      %s30 = scalar_select %p27, %s29, %s20
      %p31 = scmp.ge.s32.totalorder %s30, 2
      %s32 = scalar_select %p31, 0, %s30
      %s33 = ssub.s32 %s20, %s32
      %s34 = ssub.s32 %s21, %s28
      %s35 = sor.u32 %s33, %s34
      %p36 = scmp.eq.s32.totalorder %s35, 0
      %s38 = sadd.s32 %s37, 1
      %s39 = scalar_select %p36, %s37, %s38
      %p42 = pneg %p36
      %p43 = scmp.eq.s32.totalorder %s13, 1
      %p44 = por %p42, %p43
      %p45 = scmp.ne.s32.totalorder %s37, %s40
      %p46 = scmp.eq.s32.totalorder %s13, 0
      %p47 = por %p45, %p46
      %p48 = scmp.ne.s32.totalorder %s37, %s40
      %p49 = scmp.eq.s32.totalorder %s18, 1
      %p50 = por %p48, %p49
      %p51 = scmp.ne.s32.totalorder %s40, %s41
      %p52 = scmp.eq.s32.totalorder %s18, 0
      %p53 = por %p51, %p52
      %p54 = scmp.ne.s32.totalorder %s40, %s41
      %p55 = scmp.eq.s32.totalorder %s19, 1
      %p56 = por %p54, %p55
      %p58 = scmp.ne.s32.totalorder %s41, %s57
      %p59 = scmp.eq.s32.totalorder %s19, 0
      %p60 = por %p58, %p59
      %s62 = sadd.s32 %s61, 1
      %p65 = scmp.eq.s32.totalorder %s13, 1
      %p66 = scmp.ne.s32.totalorder %s61, %s63
      %p67 = scmp.eq.s32.totalorder %s13, 0
      %p68 = por %p66, %p67
      %p69 = scmp.ne.s32.totalorder %s61, %s63
      %p70 = scmp.eq.s32.totalorder %s18, 1
      %p71 = por %p69, %p70
      %p72 = scmp.ne.s32.totalorder %s63, %s64
      %p73 = scmp.eq.s32.totalorder %s18, 0
      %p74 = por %p72, %p73
      %p75 = scmp.ne.s32.totalorder %s63, %s64
      %p76 = scmp.eq.s32.totalorder %s19, 1
      %p77 = por %p75, %p76
      %p79 = scmp.ne.s32.totalorder %s64, %s78
      %p80 = scmp.eq.s32.totalorder %s19, 0
      %p81 = por %p79, %p80
      %s83 = sadd.s32 %s82, 1
      %p86 = scmp.eq.s32.totalorder %s13, 1
      %p87 = scmp.ne.s32.totalorder %s82, %s84
      %p88 = scmp.eq.s32.totalorder %s13, 0
      %p89 = por %p87, %p88
      %p90 = scmp.ne.s32.totalorder %s82, %s84
      %p91 = scmp.eq.s32.totalorder %s18, 1
      %p92 = por %p90, %p91
      %p93 = scmp.ne.s32.totalorder %s84, %s85
      %p94 = scmp.eq.s32.totalorder %s18, 0
      %p95 = por %p93, %p94
      %p96 = scmp.ne.s32.totalorder %s84, %s85
      %p97 = scmp.eq.s32.totalorder %s19, 1
      %p98 = por %p96, %p97
      %p100 = scmp.ne.s32.totalorder %s85, %s99
      %p101 = scmp.eq.s32.totalorder %s19, 0
      %p102 = por %p100, %p101
      %s104 = sadd.s32 %s103, 1
      %p107 = scmp.eq.s32.totalorder %s13, 1
      %p108 = scmp.ne.s32.totalorder %s103, %s105
      %p109 = scmp.eq.s32.totalorder %s13, 0
      %p110 = por %p108, %p109
      %p111 = scmp.ne.s32.totalorder %s103, %s105
      %p112 = scmp.eq.s32.totalorder %s18, 1
      %p113 = por %p111, %p112
      %p114 = scmp.ne.s32.totalorder %s105, %s106
      %p115 = scmp.eq.s32.totalorder %s18, 0
      %p116 = por %p114, %p115
      %p117 = scmp.ne.s32.totalorder %s105, %s106
      %p118 = scmp.eq.s32.totalorder %s19, 1
      %p119 = por %p117, %p118
      %p121 = scmp.ne.s32.totalorder %s106, %s120
      %p122 = scmp.eq.s32.totalorder %s19, 0
      %p123 = por %p121, %p122
      %s124 = ssub.s32 %s20, %s32
      %s125 = ssub.s32 %s21, %s28
      %s126 = sor.u32 %s124, %s125
      %p127 = scmp.eq.s32.totalorder %s126, 0
      %s129 = sadd.s32 %s128, 1
      %s130 = scalar_select %p127, %s128, %s129
      %p133 = pneg %p127
      %p134 = scmp.eq.s32.totalorder %s13, 1
      %p135 = por %p133, %p134
      %p136 = scmp.ne.s32.totalorder %s128, %s131
      %p137 = scmp.eq.s32.totalorder %s13, 0
      %p138 = por %p136, %p137
      %p139 = scmp.ne.s32.totalorder %s128, %s131
      %p140 = scmp.eq.s32.totalorder %s18, 1
      %p141 = por %p139, %p140
      %p142 = scmp.ne.s32.totalorder %s131, %s132
      %p143 = scmp.eq.s32.totalorder %s18, 0
      %p144 = por %p142, %p143
      %p145 = scmp.ne.s32.totalorder %s131, %s132
      %p146 = scmp.eq.s32.totalorder %s19, 1
      %p147 = por %p145, %p146
      %p149 = scmp.ne.s32.totalorder %s132, %s148
      %p150 = scmp.eq.s32.totalorder %s19, 0
      %p151 = por %p149, %p150
      %p152 = scmp.le.s32.totalorder 1, %s13
      %p153 = scmp.lt.s32.totalorder %s13, 3
      %p154 = pnand %p152, %p153
      %p155 = pneg %p154
      // Predicated region
      $region9: #{tpu_custom_call.1} parent=5 // pred_check
        _
      $region10: #{tpu_custom_call.1} parent=5 // pred_check_branch
        %157 = sbr.rel (%p154) target = $region12
      $region11: #{tpu_custom_call.1} parent=5 // pred_region
        %s158 = ssub.s32 %s13, 1
        // Predicated region
        $region13: #{tpu_custom_call.1} parent=11 // pred_check
          %p159 = pneg %p74
        $region14: #{tpu_custom_call.1} parent=11 // pred_check_branch
          %161 = sbr.rel (%p159) target = $region16
        $region15: #{tpu_custom_call.1} parent=11 // pred_region
          _
        $region16: #{tpu_custom_call.1} parent=11 // pred_fallthru
          _
        // Predicated region
        $region17: #{tpu_custom_call.1} parent=11 // pred_check
          %p162 = pneg %p95
        $region18: #{tpu_custom_call.1} parent=11 // pred_check_branch
          %164 = sbr.rel (%p162) target = $region20
        $region19: #{tpu_custom_call.1} parent=11 // pred_region
          _
        $region20: #{tpu_custom_call.1} parent=11 // pred_fallthru
          _
        // Predicated region
        $region21: #{tpu_custom_call.1} parent=11 // pred_check
          %p165 = pneg %p116
        $region22: #{tpu_custom_call.1} parent=11 // pred_check_branch
          %167 = sbr.rel (%p165) target = $region24
        $region23: #{tpu_custom_call.1} parent=11 // pred_region
          _
        $region24: #{tpu_custom_call.1} parent=11 // pred_fallthru
          _
      $region12: #{tpu_custom_call.1} parent=5 // pred_fallthru
        _
      %p168 = scmp.lt.s32.totalorder %s13, 2
      // Predicated region
      $region25: #{tpu_custom_call.1} parent=5 // pred_check
        %p169 = pneg %p168
      $region26: #{tpu_custom_call.1} parent=5 // pred_check_branch
        %171 = sbr.rel (%p169) target = $region28
      $region27: #{tpu_custom_call.1} parent=5 // pred_region
        // Predicated region
        $region29: #{tpu_custom_call.1} parent=27 // pred_check
          %p172 = pneg %p47
        $region30: #{tpu_custom_call.1} parent=27 // pred_check_branch
          %174 = sbr.rel (%p172) target = $region32
        $region31: #{tpu_custom_call.1} parent=27 // pred_region
          %s175 = smul.u32 2, %s21
          %p176 = scmp.lt.s32.totalorder %s20, 1
          %s177 = scalar_select %p176, %s20, 1
          %p178 = scmp.lt.s32.totalorder %s175, 1
          %s179 = scalar_select %p178, %s175, 1
          %s180 = smul.addr %s177, 10
          %s181 = sadd.s32 %s179, %s180
          %s182 = smul.addr %s181, 4
          %s183 = scalar_lea.vmem %s0, %s182
          %s184 = smul.u32 2, %s21
        $region32: #{tpu_custom_call.1} parent=27 // pred_fallthru
          _
      $region28: #{tpu_custom_call.1} parent=5 // pred_fallthru
        _
      %p185 = scmp.le.s32.totalorder 1, %s13
      %p186 = scmp.lt.s32.totalorder %s13, 3
      %p187 = pnand %p185, %p186
      %p188 = pneg %p187
      // Predicated region
      $region33: #{tpu_custom_call.1} parent=5 // pred_check
        _
      $region34: #{tpu_custom_call.1} parent=5 // pred_check_branch
        %190 = sbr.rel (%p187) target = $region36
      $region35: #{tpu_custom_call.1} parent=5 // pred_region
        %s191 = ssub.s32 %s13, 1
        %s192 = smul.u32 2, %s23
        %p193 = scmp.lt.s32.totalorder %s22, 1
        %s194 = scalar_select %p193, %s22, 1
        %p195 = scmp.lt.s32.totalorder %s192, 1
        %s196 = scalar_select %p195, %s192, 1
        %s197 = smul.addr %s194, 10
        %s198 = sadd.s32 %s196, %s197
        %s199 = smul.addr %s198, 4
        %s200 = scalar_lea.vmem %s0, %s199
        %p201 = pneg %p53
        %p202 = pneg %p50
        %p203 = pneg %p74
        %p204 = pneg %p71
        %p205 = pneg %p95
        %p206 = pneg %p92
        %p207 = pneg %p116
        %p208 = pneg %p113
        %p209 = pneg %p144
        %p210 = pneg %p141
        %s211 = sand.u32 %s131, 1
        %s212 = scalar_lea.sflag [#allocation3], %s211
        %s213 = sand.u32 %s131, 1
        %s214 = smul.addr %s213, 512
        %s215 = scalar_lea.vmem [#allocation2], %s214
        %s216 = smul.u32 2, %s23
        %p217 = scmp.lt.s32.totalorder %s22, 1
        %s218 = scalar_select %p217, %s22, 1
        %p219 = scmp.lt.s32.totalorder %s216, 1
        %s220 = scalar_select %p219, %s216, 1
        %s221 = smul.addr %s218, 10
        %s222 = sadd.s32 %s220, %s221
        %s223 = smul.addr %s222, 4
        %s224 = scalar_lea.vmem %s0, %s223
        %s225 = smul.u32 2, %s23
        %s226 = smul.u32 2, %s23
        %v228 = vld [vmem:[%s1] sm:$0xf]
        %v229 = vld [vmem:[%s1 + $0x4] sm:$0xf]
        %v230 = vld [vmem:[%s1 + $0x8] sm:$0xf]
        %v231 = vld [vmem:[%s1 + $0xc] sm:$0xf]
        %v232 = vld [vmem:[%s1 + $0x10] sm:$0xf]
        %v233 = vld [vmem:[%s1 + $0x14] sm:$0xf]
        %v234 = vld [vmem:[%s1 + $0x18] sm:$0xf]
        %v235 = vld [vmem:[%s1 + $0x1c] sm:$0xf]
        %v236 = vld [vmem:[%s1 + $0x20] sm:$0xf]
        %v237 = vld [vmem:[%s1 + $0x24] sm:$0xf]
        %v238 = vld [vmem:[%s1 + $0x28] sm:$0xf]
        %v239 = vld [vmem:[%s1 + $0x2c] sm:$0xf]
        %v240 = vld [vmem:[%s1 + $0x30] sm:$0xf]
        %v241 = vld [vmem:[%s1 + $0x34] sm:$0xf]
        %v242 = vld [vmem:[%s1 + $0x38] sm:$0xf]
        %v243 = vld [vmem:[%s1 + $0x3c] sm:$0xf]
        %v244 = vld [vmem:[%s1 + $0x40] sm:$0xf]
        %v245 = vld [vmem:[%s1 + $0x44] sm:$0xf]
        %v246 = vld [vmem:[%s1 + $0x48] sm:$0xf]
        %v247 = vld [vmem:[%s1 + $0x4c] sm:$0xf]
        %v248 = vld [vmem:[%s1 + $0x50] sm:$0xf]
        %v249 = vld [vmem:[%s1 + $0x54] sm:$0xf]
        %v250 = vld [vmem:[%s1 + $0x58] sm:$0xf]
        %v251 = vld [vmem:[%s1 + $0x5c] sm:$0xf]
        %v252 = vld [vmem:[%s1 + $0x60] sm:$0xf]
        %v253 = vld [vmem:[%s1 + $0x64] sm:$0xf]
        %v254 = vld [vmem:[%s1 + $0x68] sm:$0xf]
        %v255 = vld [vmem:[%s1 + $0x6c] sm:$0xf]
        %v256 = vld [vmem:[%s1 + $0x70] sm:$0xf]
        %v257 = vld [vmem:[%s1 + $0x74] sm:$0xf]
        %v258 = vld [vmem:[%s1 + $0x78] sm:$0xf]
        %v259 = vld [vmem:[%s1 + $0x7c] sm:$0xf]
        %v260 = vld [vmem:[%s224] sm:$0xff]
        %v261 = vld [vmem:[%s224 + $0x8] sm:$0xff]
        %v262 = vld [vmem:[%s224 + $0x10] sm:$0xff]
        %v263 = vld [vmem:[%s224 + $0x18] sm:$0xff]
        %v264 = vld [vmem:[%s224 + $0x20] sm:$0x33]
        %v297 = vunpack.c.l.b16 %v228
        %v298 = vunpack.c.l.b16 %v229
        %v299 = vunpack.c.l.b16 %v230
        %v300 = vunpack.c.l.b16 %v231
        %v301 = vunpack.c.l.b16 %v232
        %v302 = vunpack.c.l.b16 %v233
        %v303 = vunpack.c.l.b16 %v234
        %v304 = vunpack.c.l.b16 %v235
        %v305 = vunpack.c.l.b16 %v236
        %v306 = vunpack.c.l.b16 %v237
        %v307 = vunpack.c.l.b16 %v238
        %v308 = vunpack.c.l.b16 %v239
        %v309 = vunpack.c.l.b16 %v240
        %v310 = vunpack.c.l.b16 %v241
        %v311 = vunpack.c.l.b16 %v242
        %v312 = vunpack.c.l.b16 %v243
        %v313 = vunpack.c.l.b16 %v244
        %v314 = vunpack.c.l.b16 %v245
        %v315 = vunpack.c.l.b16 %v246
        %v316 = vunpack.c.l.b16 %v247
        %v317 = vunpack.c.l.b16 %v248
        %v318 = vunpack.c.l.b16 %v249
        %v319 = vunpack.c.l.b16 %v250
        %v320 = vunpack.c.l.b16 %v251
        %v321 = vunpack.c.l.b16 %v252
        %v322 = vunpack.c.l.b16 %v253
        %v323 = vunpack.c.l.b16 %v254
        %v324 = vunpack.c.l.b16 %v255
        %v325 = vunpack.c.l.b16 %v256
        %v326 = vunpack.c.l.b16 %v257
        %v327 = vunpack.c.l.b16 %v258
        %v328 = vunpack.c.l.b16 %v259
        %v329 = vpack.c.b16 %v298, %v297
        %v330 = vpack.c.b16 %v300, %v299
        %v331 = vpack.c.b16 %v302, %v301
        %v332 = vpack.c.b16 %v304, %v303
        %v333 = vpack.c.b16 %v306, %v305
        %v334 = vpack.c.b16 %v308, %v307
        %v335 = vpack.c.b16 %v310, %v309
        %v336 = vpack.c.b16 %v312, %v311
        %v337 = vpack.c.b16 %v314, %v313
        %v338 = vpack.c.b16 %v316, %v315
        %v339 = vpack.c.b16 %v318, %v317
        %v340 = vpack.c.b16 %v320, %v319
        %v341 = vpack.c.b16 %v322, %v321
        %v342 = vpack.c.b16 %v324, %v323
        %v343 = vpack.c.b16 %v326, %v325
        %v344 = vpack.c.b16 %v328, %v327
        %v350 = vunpack.c.l.b16 %v260
        %v351 = vunpack.c.h.b16 %v260
        %v352 = vunpack.c.l.b16 %v261
        %v353 = vunpack.c.h.b16 %v261
        %v354 = vunpack.c.l.b16 %v262
        %v355 = vunpack.c.h.b16 %v262
        %v356 = vunpack.c.l.b16 %v263
        %v357 = vunpack.c.h.b16 %v263
        %v358 = vunpack.c.l.b16 %v264
        %v359 = vunpack.c.h.b16 %v264
        %v360 = vpack.c.b16 %v352, %v350
        %v361 = vpack.c.b16 %v353, %v351
        %v362 = vpack.c.b16 %v356, %v354
        %v363 = vpack.c.b16 %v357, %v355
        %v364 = vpack.c.b16 %v358, %v358
        %v365 = vpack.c.b16 %v359, %v359
        %vm370 = vcmask 293888
        %v372 = vsel %vm370, %v329, 0
        %v375 = vsel %vm370, %v330, 0
        %v378 = vsel %vm370, %v331, 0
        %v381 = vsel %vm370, %v332, 0
        %v384 = vsel %vm370, %v333, 0
        %v387 = vsel %vm370, %v334, 0
        %v390 = vsel %vm370, %v335, 0
        %v393 = vsel %vm370, %v336, 0
        %v396 = vsel %vm370, %v337, 0
        %v399 = vsel %vm370, %v338, 0
        %v402 = vsel %vm370, %v339, 0
        %v405 = vsel %vm370, %v340, 0
        %v408 = vsel %vm370, %v341, 0
        %v411 = vsel %vm370, %v342, 0
        %v414 = vsel %vm370, %v343, 0
        %v417 = vsel %vm370, %v344, 0
        %vm419 = vcmask 1041408
        %v421 = vsel %vm419, %v364, 0
        %v424 = vsel %vm419, %v365, 0
        %426 = vmatprep.subr.bf16.mxu0 %v361
        %427 = vmatpush1.bf16.msra.mxu0 %v360
        %428 = vmatprep.subr.bf16.mxu0 %v363
        %429 = vmatpush1.bf16.msra.mxu0 %v362
        %430 = vmatprep.subr.bf16.mxu0 %v424
        %431 = vmatpush1.bf16.msra.mxu0 %v421
        %432 = vmatprep.subr.bf16.mxu0 0
        %433 = vmatpush1.bf16.msra.mxu0 0
        %434 = vmatprep.subr.bf16.mxu0 0
        %435 = vmatpush1.bf16.msra.mxu0 0
        %436 = vmatprep.subr.bf16.mxu0 0
        %437 = vmatpush1.bf16.msra.mxu0 0
        %438 = vmatprep.subr.bf16.mxu0 0
        %439 = vmatpush1.bf16.msra.mxu0 0
        %440 = vmatprep.subr.bf16.mxu0 0
        %441 = vmatpush1.bf16.msra.mxu0 0
        %442 = vmatprep.subr.bf16.mxu0 0
        %443 = vmatpush1.bf16.msra.mxu0 0
        %444 = vmatprep.subr.bf16.mxu0 0
        %445 = vmatpush1.bf16.msra.mxu0 0
        %446 = vmatprep.subr.bf16.mxu0 0
        %447 = vmatpush1.bf16.msra.mxu0 0
        %448 = vmatprep.subr.bf16.mxu0 0
        %449 = vmatpush1.bf16.msra.mxu0 0
        %450 = vmatprep.subr.bf16.mxu0 0
        %451 = vmatpush1.bf16.msra.mxu0 0
        %452 = vmatprep.subr.bf16.mxu0 0
        %453 = vmatpush1.bf16.msra.mxu0 0
        %454 = vmatprep.subr.bf16.mxu0 0
        %455 = vmatpush1.bf16.msra.mxu0 0
        %456 = vmatprep.subr.bf16.mxu0 0
        %457 = vmatpush1.bf16.msra.mxu0 0
        %458 = vmatprep.mubr.bf16.mxu0 0
        %459 = vmatmul.mubr.bf16.gmra.mrb[0].mxu0 %v372
        %v460 = vpop.f32.mrb[0].mxu0
        %v461 = vadd.f32 0.0, %v460
        %v462 = vpop.f32.mrb[0].mxu0
        %v463 = vadd.f32 0.0, %v462
        %v464 = vpop.f32.mrb[0].mxu0
        %v465 = vadd.f32 0.0, %v464
        %v466 = vpop.f32.mrb[0].mxu0
        %v467 = vadd.f32 0.0, %v466
        %468 = vmatprep.mubr.bf16.mxu0 0
        %469 = vmatmul.mubr.bf16.gmra.mrb[0].mxu0 %v375
        %v470 = vpop.f32.mrb[0].mxu0
        %v471 = vadd.f32 0.0, %v470
        %v472 = vpop.f32.mrb[0].mxu0
        %v473 = vadd.f32 0.0, %v472
        %v474 = vpop.f32.mrb[0].mxu0
        %v475 = vadd.f32 0.0, %v474
        %v476 = vpop.f32.mrb[0].mxu0
        %v477 = vadd.f32 0.0, %v476
        %478 = vmatprep.mubr.bf16.mxu0 0
        %479 = vmatmul.mubr.bf16.gmra.mrb[0].mxu0 %v378
        %v480 = vpop.f32.mrb[0].mxu0
        %v481 = vadd.f32 0.0, %v480
        %v482 = vpop.f32.mrb[0].mxu0
        %v483 = vadd.f32 0.0, %v482
        %v484 = vpop.f32.mrb[0].mxu0
        %v485 = vadd.f32 0.0, %v484
        %v486 = vpop.f32.mrb[0].mxu0
        %v487 = vadd.f32 0.0, %v486
        %488 = vmatprep.mubr.bf16.mxu0 0
        %489 = vmatmul.mubr.bf16.gmra.mrb[0].mxu0 %v381
        %v490 = vpop.f32.mrb[0].mxu0
        %v491 = vadd.f32 0.0, %v490
        %v492 = vpop.f32.mrb[0].mxu0
        %v493 = vadd.f32 0.0, %v492
        %v494 = vpop.f32.mrb[0].mxu0
        %v495 = vadd.f32 0.0, %v494
        %v496 = vpop.f32.mrb[0].mxu0
        %v497 = vadd.f32 0.0, %v496
        %498 = vmatprep.mubr.bf16.mxu0 0
        %499 = vmatmul.mubr.bf16.gmra.mrb[0].mxu0 %v384
        %v500 = vpop.f32.mrb[0].mxu0
        %v501 = vadd.f32 0.0, %v500
        %v502 = vpop.f32.mrb[0].mxu0
        %v503 = vadd.f32 0.0, %v502
        %v504 = vpop.f32.mrb[0].mxu0
        %v505 = vadd.f32 0.0, %v504
        %v506 = vpop.f32.mrb[0].mxu0
        %v507 = vadd.f32 0.0, %v506
        %508 = vmatprep.mubr.bf16.mxu0 0
        %509 = vmatmul.mubr.bf16.gmra.mrb[0].mxu0 %v387
        %v510 = vpop.f32.mrb[0].mxu0
        %v511 = vadd.f32 0.0, %v510
        %v512 = vpop.f32.mrb[0].mxu0
        %v513 = vadd.f32 0.0, %v512
        %v514 = vpop.f32.mrb[0].mxu0
        %v515 = vadd.f32 0.0, %v514
        %v516 = vpop.f32.mrb[0].mxu0
        %v517 = vadd.f32 0.0, %v516
        %518 = vmatprep.mubr.bf16.mxu0 0
        %519 = vmatmul.mubr.bf16.gmra.mrb[0].mxu0 %v390
        %v520 = vpop.f32.mrb[0].mxu0
        %v521 = vadd.f32 0.0, %v520
        %v522 = vpop.f32.mrb[0].mxu0
        %v523 = vadd.f32 0.0, %v522
        %v524 = vpop.f32.mrb[0].mxu0
        %v525 = vadd.f32 0.0, %v524
        %v526 = vpop.f32.mrb[0].mxu0
        %v527 = vadd.f32 0.0, %v526
        %528 = vmatprep.mubr.bf16.mxu0 0
        %529 = vmatmul.mubr.bf16.gmra.mrb[0].mxu0 %v393
        %v530 = vpop.f32.mrb[0].mxu0
        %v531 = vadd.f32 0.0, %v530
        %v532 = vpop.f32.mrb[0].mxu0
        %v533 = vadd.f32 0.0, %v532
        %v534 = vpop.f32.mrb[0].mxu0
        %v535 = vadd.f32 0.0, %v534
        %v536 = vpop.f32.mrb[0].mxu0
        %v537 = vadd.f32 0.0, %v536
        %538 = vmatprep.mubr.bf16.mxu0 0
        %539 = vmatmul.mubr.bf16.gmra.mrb[0].mxu0 %v396
        %v540 = vpop.f32.mrb[0].mxu0
        %v541 = vadd.f32 0.0, %v540
        %v542 = vpop.f32.mrb[0].mxu0
        %v543 = vadd.f32 0.0, %v542
        %v544 = vpop.f32.mrb[0].mxu0
        %v545 = vadd.f32 0.0, %v544
        %v546 = vpop.f32.mrb[0].mxu0
        %v547 = vadd.f32 0.0, %v546
        %548 = vmatprep.mubr.bf16.mxu0 0
        %549 = vmatmul.mubr.bf16.gmra.mrb[0].mxu0 %v399
        %v550 = vpop.f32.mrb[0].mxu0
        %v551 = vadd.f32 0.0, %v550
        %v552 = vpop.f32.mrb[0].mxu0
        %v553 = vadd.f32 0.0, %v552
        %v554 = vpop.f32.mrb[0].mxu0
        %v555 = vadd.f32 0.0, %v554
        %v556 = vpop.f32.mrb[0].mxu0
        %v557 = vadd.f32 0.0, %v556
        %558 = vmatprep.mubr.bf16.mxu0 0
        %559 = vmatmul.mubr.bf16.gmra.mrb[0].mxu0 %v402
        %v560 = vpop.f32.mrb[0].mxu0
        %v561 = vadd.f32 0.0, %v560
        %v562 = vpop.f32.mrb[0].mxu0
        %v563 = vadd.f32 0.0, %v562
        %v564 = vpop.f32.mrb[0].mxu0
        %v565 = vadd.f32 0.0, %v564
        %v566 = vpop.f32.mrb[0].mxu0
        %v567 = vadd.f32 0.0, %v566
        %568 = vmatprep.mubr.bf16.mxu0 0
        %569 = vmatmul.mubr.bf16.gmra.mrb[0].mxu0 %v405
        %v570 = vpop.f32.mrb[0].mxu0
        %v571 = vadd.f32 0.0, %v570
        %v572 = vpop.f32.mrb[0].mxu0
        %v573 = vadd.f32 0.0, %v572
        %v574 = vpop.f32.mrb[0].mxu0
        %v575 = vadd.f32 0.0, %v574
        %v576 = vpop.f32.mrb[0].mxu0
        %v577 = vadd.f32 0.0, %v576
        %578 = vmatprep.mubr.bf16.mxu0 0
        %579 = vmatmul.mubr.bf16.gmra.mrb[0].mxu0 %v408
        %v580 = vpop.f32.mrb[0].mxu0
        %v581 = vadd.f32 0.0, %v580
        %v582 = vpop.f32.mrb[0].mxu0
        %v583 = vadd.f32 0.0, %v582
        %v584 = vpop.f32.mrb[0].mxu0
        %v585 = vadd.f32 0.0, %v584
        %v586 = vpop.f32.mrb[0].mxu0
        %v587 = vadd.f32 0.0, %v586
        %588 = vmatprep.mubr.bf16.mxu0 0
        %589 = vmatmul.mubr.bf16.gmra.mrb[0].mxu0 %v411
        %v590 = vpop.f32.mrb[0].mxu0
        %v591 = vadd.f32 0.0, %v590
        %v592 = vpop.f32.mrb[0].mxu0
        %v593 = vadd.f32 0.0, %v592
        %v594 = vpop.f32.mrb[0].mxu0
        %v595 = vadd.f32 0.0, %v594
        %v596 = vpop.f32.mrb[0].mxu0
        %v597 = vadd.f32 0.0, %v596
        %598 = vmatprep.mubr.bf16.mxu0 0
        %599 = vmatmul.mubr.bf16.gmra.mrb[0].mxu0 %v414
        %v600 = vpop.f32.mrb[0].mxu0
        %v601 = vadd.f32 0.0, %v600
        %v602 = vpop.f32.mrb[0].mxu0
        %v603 = vadd.f32 0.0, %v602
        %v604 = vpop.f32.mrb[0].mxu0
        %v605 = vadd.f32 0.0, %v604
        %v606 = vpop.f32.mrb[0].mxu0
        %v607 = vadd.f32 0.0, %v606
        %608 = vmatprep.mubr.bf16.mxu0 0
        %609 = vmatmul.mubr.bf16.gmra.mrb[0].mxu0 %v417
        %v610 = vpop.f32.mrb[0].mxu0
        %v611 = vadd.f32 0.0, %v610
        %v612 = vpop.f32.mrb[0].mxu0
        %v613 = vadd.f32 0.0, %v612
        %v614 = vpop.f32.mrb[0].mxu0
        %v615 = vadd.f32 0.0, %v614
        %v616 = vpop.f32.mrb[0].mxu0
        %v617 = vadd.f32 0.0, %v616
        %618 = vdwg.mxu0
        %v619 = vld [vmem:[%s2] sm:$0xff]
        %v620 = vld [vmem:[%s2 + $0x8] sm:$0xff]
        %v621 = vld [vmem:[%s2 + $0x10] sm:$0xff]
        %v622 = vld [vmem:[%s2 + $0x18] sm:$0xff]
        %v623 = vld [vmem:[%s2 + $0x20] sm:$0xff]
        %v624 = vld [vmem:[%s2 + $0x28] sm:$0xff]
        %v625 = vld [vmem:[%s2 + $0x30] sm:$0xff]
        %v626 = vld [vmem:[%s2 + $0x38] sm:$0xff]
        %v627 = vld [vmem:[%s2 + $0x40] sm:$0xff]
        %v628 = vld [vmem:[%s2 + $0x48] sm:$0xff]
        %v629 = vld [vmem:[%s2 + $0x50] sm:$0xff]
        %v630 = vld [vmem:[%s2 + $0x58] sm:$0xff]
        %v631 = vld [vmem:[%s2 + $0x60] sm:$0xff]
        %v632 = vld [vmem:[%s2 + $0x68] sm:$0xff]
        %v633 = vld [vmem:[%s2 + $0x70] sm:$0xff]
        %v634 = vld [vmem:[%s2 + $0x78] sm:$0xff]
        %v635 = vld [vmem:[%s2 + $0x80] sm:$0xff]
        %v636 = vld [vmem:[%s2 + $0x88] sm:$0xff]
        %v637 = vld [vmem:[%s2 + $0x90] sm:$0xff]
        %v638 = vld [vmem:[%s2 + $0x98] sm:$0xff]
        %v639 = vld [vmem:[%s2 + $0xa0] sm:$0xff]
        %v640 = vld [vmem:[%s2 + $0xa8] sm:$0xff]
        %v641 = vld [vmem:[%s2 + $0xb0] sm:$0xff]
        %v642 = vld [vmem:[%s2 + $0xb8] sm:$0xff]
        %v643 = vld [vmem:[%s2 + $0xc0] sm:$0xff]
        %v644 = vld [vmem:[%s2 + $0xc8] sm:$0xff]
        %v645 = vld [vmem:[%s2 + $0xd0] sm:$0xff]
        %v646 = vld [vmem:[%s2 + $0xd8] sm:$0xff]
        %v647 = vld [vmem:[%s2 + $0xe0] sm:$0xff]
        %v648 = vld [vmem:[%s2 + $0xe8] sm:$0xff]
        %v649 = vld [vmem:[%s2 + $0xf0] sm:$0xff]
        %v650 = vld [vmem:[%s2 + $0xf8] sm:$0xff]
        %652 = vset.pattern.permute.xlu0 0
        %653 = vperm.xlu0 %652, %v619
        %v654 = vpop.permute.xlu0 %653
        %657 = vset.pattern.permute.xlu0 0
        %658 = vperm.xlu0 %657, %v620
        %v659 = vpop.permute.xlu0 %658
        %662 = vset.pattern.permute.xlu0 0
        %663 = vperm.xlu0 %662, %v621
        %v664 = vpop.permute.xlu0 %663
        %667 = vset.pattern.permute.xlu0 0
        %668 = vperm.xlu0 %667, %v622
        %v669 = vpop.permute.xlu0 %668
        %672 = vset.pattern.permute.xlu0 0
        %673 = vperm.xlu0 %672, %v623
        %v674 = vpop.permute.xlu0 %673
        %677 = vset.pattern.permute.xlu0 0
        %678 = vperm.xlu0 %677, %v624
        %v679 = vpop.permute.xlu0 %678
        %682 = vset.pattern.permute.xlu0 0
        %683 = vperm.xlu0 %682, %v625
        %v684 = vpop.permute.xlu0 %683
        %687 = vset.pattern.permute.xlu0 0
        %688 = vperm.xlu0 %687, %v626
        %v689 = vpop.permute.xlu0 %688
        %692 = vset.pattern.permute.xlu0 0
        %693 = vperm.xlu0 %692, %v627
        %v694 = vpop.permute.xlu0 %693
        %697 = vset.pattern.permute.xlu0 0
        %698 = vperm.xlu0 %697, %v628
        %v699 = vpop.permute.xlu0 %698
        %702 = vset.pattern.permute.xlu0 0
        %703 = vperm.xlu0 %702, %v629
        %v704 = vpop.permute.xlu0 %703
        %707 = vset.pattern.permute.xlu0 0
        %708 = vperm.xlu0 %707, %v630
        %v709 = vpop.permute.xlu0 %708
        %712 = vset.pattern.permute.xlu0 0
        %713 = vperm.xlu0 %712, %v631
        %v714 = vpop.permute.xlu0 %713
        %717 = vset.pattern.permute.xlu0 0
        %718 = vperm.xlu0 %717, %v632
        %v719 = vpop.permute.xlu0 %718
        %722 = vset.pattern.permute.xlu0 0
        %723 = vperm.xlu0 %722, %v633
        %v724 = vpop.permute.xlu0 %723
        %727 = vset.pattern.permute.xlu0 0
        %728 = vperm.xlu0 %727, %v634
        %v729 = vpop.permute.xlu0 %728
        %732 = vset.pattern.permute.xlu0 0
        %733 = vperm.xlu0 %732, %v635
        %v734 = vpop.permute.xlu0 %733
        %737 = vset.pattern.permute.xlu0 0
        %738 = vperm.xlu0 %737, %v636
        %v739 = vpop.permute.xlu0 %738
        %742 = vset.pattern.permute.xlu0 0
        %743 = vperm.xlu0 %742, %v637
        %v744 = vpop.permute.xlu0 %743
        %747 = vset.pattern.permute.xlu0 0
        %748 = vperm.xlu0 %747, %v638
        %v749 = vpop.permute.xlu0 %748
        %752 = vset.pattern.permute.xlu0 0
        %753 = vperm.xlu0 %752, %v639
        %v754 = vpop.permute.xlu0 %753
        %757 = vset.pattern.permute.xlu0 0
        %758 = vperm.xlu0 %757, %v640
        %v759 = vpop.permute.xlu0 %758
        %762 = vset.pattern.permute.xlu0 0
        %763 = vperm.xlu0 %762, %v641
        %v764 = vpop.permute.xlu0 %763
        %767 = vset.pattern.permute.xlu0 0
        %768 = vperm.xlu0 %767, %v642
        %v769 = vpop.permute.xlu0 %768
        %772 = vset.pattern.permute.xlu0 0
        %773 = vperm.xlu0 %772, %v643
        %v774 = vpop.permute.xlu0 %773
        %777 = vset.pattern.permute.xlu0 0
        %778 = vperm.xlu0 %777, %v644
        %v779 = vpop.permute.xlu0 %778
        %782 = vset.pattern.permute.xlu0 0
        %783 = vperm.xlu0 %782, %v645
        %v784 = vpop.permute.xlu0 %783
        %787 = vset.pattern.permute.xlu0 0
        %788 = vperm.xlu0 %787, %v646
        %v789 = vpop.permute.xlu0 %788
        %792 = vset.pattern.permute.xlu0 0
        %793 = vperm.xlu0 %792, %v647
        %v794 = vpop.permute.xlu0 %793
        %797 = vset.pattern.permute.xlu0 0
        %798 = vperm.xlu0 %797, %v648
        %v799 = vpop.permute.xlu0 %798
        %802 = vset.pattern.permute.xlu0 0
        %803 = vperm.xlu0 %802, %v649
        %v804 = vpop.permute.xlu0 %803
        %807 = vset.pattern.permute.xlu0 0
        %808 = vperm.xlu0 %807, %v650
        %v809 = vpop.permute.xlu0 %808
        %v811 = vmul.f32 %v461, %v654
        %v812 = vmul.f32 %v463, %v654
        %v813 = vmul.f32 %v465, %v659
        %v814 = vmul.f32 %v467, %v659
        %v815 = vmul.f32 %v471, %v664
        %v816 = vmul.f32 %v473, %v664
        %v817 = vmul.f32 %v475, %v669
        %v818 = vmul.f32 %v477, %v669
        %v819 = vmul.f32 %v481, %v674
        %v820 = vmul.f32 %v483, %v674
        %v821 = vmul.f32 %v485, %v679
        %v822 = vmul.f32 %v487, %v679
        %v823 = vmul.f32 %v491, %v684
        %v824 = vmul.f32 %v493, %v684
        %v825 = vmul.f32 %v495, %v689
        %v826 = vmul.f32 %v497, %v689
        %v827 = vmul.f32 %v501, %v694
        %v828 = vmul.f32 %v503, %v694
        %v829 = vmul.f32 %v505, %v699
        %v830 = vmul.f32 %v507, %v699
        %v831 = vmul.f32 %v511, %v704
        %v832 = vmul.f32 %v513, %v704
        %v833 = vmul.f32 %v515, %v709
        %v834 = vmul.f32 %v517, %v709
        %v835 = vmul.f32 %v521, %v714
        %v836 = vmul.f32 %v523, %v714
        %v837 = vmul.f32 %v525, %v719
        %v838 = vmul.f32 %v527, %v719
        %v839 = vmul.f32 %v531, %v724
        %v840 = vmul.f32 %v533, %v724
        %v841 = vmul.f32 %v535, %v729
        %v842 = vmul.f32 %v537, %v729
        %v843 = vmul.f32 %v541, %v734
        %v844 = vmul.f32 %v543, %v734
        %v845 = vmul.f32 %v545, %v739
        %v846 = vmul.f32 %v547, %v739
        %v847 = vmul.f32 %v551, %v744
        %v848 = vmul.f32 %v553, %v744
        %v849 = vmul.f32 %v555, %v749
        %v850 = vmul.f32 %v557, %v749
        %v851 = vmul.f32 %v561, %v754
        %v852 = vmul.f32 %v563, %v754
        %v853 = vmul.f32 %v565, %v759
        %v854 = vmul.f32 %v567, %v759
        %v855 = vmul.f32 %v571, %v764
        %v856 = vmul.f32 %v573, %v764
        %v857 = vmul.f32 %v575, %v769
        %v858 = vmul.f32 %v577, %v769
        %v859 = vmul.f32 %v581, %v774
        %v860 = vmul.f32 %v583, %v774
        %v861 = vmul.f32 %v585, %v779
        %v862 = vmul.f32 %v587, %v779
        %v863 = vmul.f32 %v591, %v784
        %v864 = vmul.f32 %v593, %v784
        %v865 = vmul.f32 %v595, %v789
        %v866 = vmul.f32 %v597, %v789
        %v867 = vmul.f32 %v601, %v794
        %v868 = vmul.f32 %v603, %v794
        %v869 = vmul.f32 %v605, %v799
        %v870 = vmul.f32 %v607, %v799
        %v871 = vmul.f32 %v611, %v804
        %v872 = vmul.f32 %v613, %v804
        %v873 = vmul.f32 %v615, %v809
        %v874 = vmul.f32 %v617, %v809
        %v875 = vld [vmem:[%s3] sm:$0xff]
        %v876 = vld [vmem:[%s3 + $0x8] sm:$0xff]
        %v877 = vld [vmem:[%s3 + $0x10] sm:$0xff]
        %v878 = vld [vmem:[%s3 + $0x18] sm:$0xff]
        %v879 = vld [vmem:[%s3 + $0x20] sm:$0xff]
        %v880 = vld [vmem:[%s3 + $0x28] sm:$0xff]
        %v881 = vld [vmem:[%s3 + $0x30] sm:$0xff]
        %v882 = vld [vmem:[%s3 + $0x38] sm:$0xff]
        %v883 = vld [vmem:[%s3 + $0x40] sm:$0xff]
        %v884 = vld [vmem:[%s3 + $0x48] sm:$0xff]
        %v885 = vld [vmem:[%s3 + $0x50] sm:$0xff]
        %v886 = vld [vmem:[%s3 + $0x58] sm:$0xff]
        %v887 = vld [vmem:[%s3 + $0x60] sm:$0xff]
        %v888 = vld [vmem:[%s3 + $0x68] sm:$0xff]
        %v889 = vld [vmem:[%s3 + $0x70] sm:$0xff]
        %v890 = vld [vmem:[%s3 + $0x78] sm:$0xff]
        %v891 = vld [vmem:[%s3 + $0x80] sm:$0xff]
        %v892 = vld [vmem:[%s3 + $0x88] sm:$0xff]
        %v893 = vld [vmem:[%s3 + $0x90] sm:$0xff]
        %v894 = vld [vmem:[%s3 + $0x98] sm:$0xff]
        %v895 = vld [vmem:[%s3 + $0xa0] sm:$0xff]
        %v896 = vld [vmem:[%s3 + $0xa8] sm:$0xff]
        %v897 = vld [vmem:[%s3 + $0xb0] sm:$0xff]
        %v898 = vld [vmem:[%s3 + $0xb8] sm:$0xff]
        %v899 = vld [vmem:[%s3 + $0xc0] sm:$0xff]
        %v900 = vld [vmem:[%s3 + $0xc8] sm:$0xff]
        %v901 = vld [vmem:[%s3 + $0xd0] sm:$0xff]
        %v902 = vld [vmem:[%s3 + $0xd8] sm:$0xff]
        %v903 = vld [vmem:[%s3 + $0xe0] sm:$0xff]
        %v904 = vld [vmem:[%s3 + $0xe8] sm:$0xff]
        %v905 = vld [vmem:[%s3 + $0xf0] sm:$0xff]
        %v906 = vld [vmem:[%s3 + $0xf8] sm:$0xff]
        %908 = vset.pattern.permute.xlu0 0
        %909 = vperm.xlu0 %908, %v875
        %v910 = vpop.permute.xlu0 %909
        %913 = vset.pattern.permute.xlu0 0
        %914 = vperm.xlu0 %913, %v876
        %v915 = vpop.permute.xlu0 %914
        %918 = vset.pattern.permute.xlu0 0
        %919 = vperm.xlu0 %918, %v877
        %v920 = vpop.permute.xlu0 %919
        %923 = vset.pattern.permute.xlu0 0
        %924 = vperm.xlu0 %923, %v878
        %v925 = vpop.permute.xlu0 %924
        %928 = vset.pattern.permute.xlu0 0
        %929 = vperm.xlu0 %928, %v879
        %v930 = vpop.permute.xlu0 %929
        %933 = vset.pattern.permute.xlu0 0
        %934 = vperm.xlu0 %933, %v880
        %v935 = vpop.permute.xlu0 %934
        %938 = vset.pattern.permute.xlu0 0
        %939 = vperm.xlu0 %938, %v881
        %v940 = vpop.permute.xlu0 %939
        %943 = vset.pattern.permute.xlu0 0
        %944 = vperm.xlu0 %943, %v882
        %v945 = vpop.permute.xlu0 %944
        %948 = vset.pattern.permute.xlu0 0
        %949 = vperm.xlu0 %948, %v883
        %v950 = vpop.permute.xlu0 %949
        %953 = vset.pattern.permute.xlu0 0
        %954 = vperm.xlu0 %953, %v884
        %v955 = vpop.permute.xlu0 %954
        %958 = vset.pattern.permute.xlu0 0
        %959 = vperm.xlu0 %958, %v885
        %v960 = vpop.permute.xlu0 %959
        %963 = vset.pattern.permute.xlu0 0
        %964 = vperm.xlu0 %963, %v886
        %v965 = vpop.permute.xlu0 %964
        %968 = vset.pattern.permute.xlu0 0
        %969 = vperm.xlu0 %968, %v887
        %v970 = vpop.permute.xlu0 %969
        %973 = vset.pattern.permute.xlu0 0
        %974 = vperm.xlu0 %973, %v888
        %v975 = vpop.permute.xlu0 %974
        %978 = vset.pattern.permute.xlu0 0
        %979 = vperm.xlu0 %978, %v889
        %v980 = vpop.permute.xlu0 %979
        %983 = vset.pattern.permute.xlu0 0
        %984 = vperm.xlu0 %983, %v890
        %v985 = vpop.permute.xlu0 %984
        %988 = vset.pattern.permute.xlu0 0
        %989 = vperm.xlu0 %988, %v891
        %v990 = vpop.permute.xlu0 %989
        %993 = vset.pattern.permute.xlu0 0
        %994 = vperm.xlu0 %993, %v892
        %v995 = vpop.permute.xlu0 %994
        %998 = vset.pattern.permute.xlu0 0
        %999 = vperm.xlu0 %998, %v893
        %v1000 = vpop.permute.xlu0 %999
        %1003 = vset.pattern.permute.xlu0 0
        %1004 = vperm.xlu0 %1003, %v894
        %v1005 = vpop.permute.xlu0 %1004
        %1008 = vset.pattern.permute.xlu0 0
        %1009 = vperm.xlu0 %1008, %v895
        %v1010 = vpop.permute.xlu0 %1009
        %1013 = vset.pattern.permute.xlu0 0
        %1014 = vperm.xlu0 %1013, %v896
        %v1015 = vpop.permute.xlu0 %1014
        %1018 = vset.pattern.permute.xlu0 0
        %1019 = vperm.xlu0 %1018, %v897
        %v1020 = vpop.permute.xlu0 %1019
        %1023 = vset.pattern.permute.xlu0 0
        %1024 = vperm.xlu0 %1023, %v898
        %v1025 = vpop.permute.xlu0 %1024
        %1028 = vset.pattern.permute.xlu0 0
        %1029 = vperm.xlu0 %1028, %v899
        %v1030 = vpop.permute.xlu0 %1029
        %1033 = vset.pattern.permute.xlu0 0
        %1034 = vperm.xlu0 %1033, %v900
        %v1035 = vpop.permute.xlu0 %1034
        %1038 = vset.pattern.permute.xlu0 0
        %1039 = vperm.xlu0 %1038, %v901
        %v1040 = vpop.permute.xlu0 %1039
        %1043 = vset.pattern.permute.xlu0 0
        %1044 = vperm.xlu0 %1043, %v902
        %v1045 = vpop.permute.xlu0 %1044
        %1048 = vset.pattern.permute.xlu0 0
        %1049 = vperm.xlu0 %1048, %v903
        %v1050 = vpop.permute.xlu0 %1049
        %1053 = vset.pattern.permute.xlu0 0
        %1054 = vperm.xlu0 %1053, %v904
        %v1055 = vpop.permute.xlu0 %1054
        %1058 = vset.pattern.permute.xlu0 0
        %1059 = vperm.xlu0 %1058, %v905
        %v1060 = vpop.permute.xlu0 %1059
        %1063 = vset.pattern.permute.xlu0 0
        %1064 = vperm.xlu0 %1063, %v906
        %v1065 = vpop.permute.xlu0 %1064
        %v1067 = vadd.f32 %v811, %v910
        %v1068 = vadd.f32 %v812, %v910
        %v1069 = vadd.f32 %v813, %v915
        %v1070 = vadd.f32 %v814, %v915
        %v1071 = vadd.f32 %v815, %v920
        %v1072 = vadd.f32 %v816, %v920
        %v1073 = vadd.f32 %v817, %v925
        %v1074 = vadd.f32 %v818, %v925
        %v1075 = vadd.f32 %v819, %v930
        %v1076 = vadd.f32 %v820, %v930
        %v1077 = vadd.f32 %v821, %v935
        %v1078 = vadd.f32 %v822, %v935
        %v1079 = vadd.f32 %v823, %v940
        %v1080 = vadd.f32 %v824, %v940
        %v1081 = vadd.f32 %v825, %v945
        %v1082 = vadd.f32 %v826, %v945
        %v1083 = vadd.f32 %v827, %v950
        %v1084 = vadd.f32 %v828, %v950
        %v1085 = vadd.f32 %v829, %v955
        %v1086 = vadd.f32 %v830, %v955
        %v1087 = vadd.f32 %v831, %v960
        %v1088 = vadd.f32 %v832, %v960
        %v1089 = vadd.f32 %v833, %v965
        %v1090 = vadd.f32 %v834, %v965
        %v1091 = vadd.f32 %v835, %v970
        %v1092 = vadd.f32 %v836, %v970
        %v1093 = vadd.f32 %v837, %v975
        %v1094 = vadd.f32 %v838, %v975
        %v1095 = vadd.f32 %v839, %v980
        %v1096 = vadd.f32 %v840, %v980
        %v1097 = vadd.f32 %v841, %v985
        %v1098 = vadd.f32 %v842, %v985
        %v1099 = vadd.f32 %v843, %v990
        %v1100 = vadd.f32 %v844, %v990
        %v1101 = vadd.f32 %v845, %v995
        %v1102 = vadd.f32 %v846, %v995
        %v1103 = vadd.f32 %v847, %v1000
        %v1104 = vadd.f32 %v848, %v1000
        %v1105 = vadd.f32 %v849, %v1005
        %v1106 = vadd.f32 %v850, %v1005
        %v1107 = vadd.f32 %v851, %v1010
        %v1108 = vadd.f32 %v852, %v1010
        %v1109 = vadd.f32 %v853, %v1015
        %v1110 = vadd.f32 %v854, %v1015
        %v1111 = vadd.f32 %v855, %v1020
        %v1112 = vadd.f32 %v856, %v1020
        %v1113 = vadd.f32 %v857, %v1025
        %v1114 = vadd.f32 %v858, %v1025
        %v1115 = vadd.f32 %v859, %v1030
        %v1116 = vadd.f32 %v860, %v1030
        %v1117 = vadd.f32 %v861, %v1035
        %v1118 = vadd.f32 %v862, %v1035
        %v1119 = vadd.f32 %v863, %v1040
        %v1120 = vadd.f32 %v864, %v1040
        %v1121 = vadd.f32 %v865, %v1045
        %v1122 = vadd.f32 %v866, %v1045
        %v1123 = vadd.f32 %v867, %v1050
        %v1124 = vadd.f32 %v868, %v1050
        %v1125 = vadd.f32 %v869, %v1055
        %v1126 = vadd.f32 %v870, %v1055
        %v1127 = vadd.f32 %v871, %v1060
        %v1128 = vadd.f32 %v872, %v1060
        %v1129 = vadd.f32 %v873, %v1065
        %v1130 = vadd.f32 %v874, %v1065
        %v1131 = vmax.f32 %v1067, 0.0
        %v1132 = vmax.f32 %v1068, 0.0
        %v1133 = vmax.f32 %v1069, 0.0
        %v1134 = vmax.f32 %v1070, 0.0
        %v1135 = vmax.f32 %v1071, 0.0
        %v1136 = vmax.f32 %v1072, 0.0
        %v1137 = vmax.f32 %v1073, 0.0
        %v1138 = vmax.f32 %v1074, 0.0
        %v1139 = vmax.f32 %v1075, 0.0
        %v1140 = vmax.f32 %v1076, 0.0
        %v1141 = vmax.f32 %v1077, 0.0
        %v1142 = vmax.f32 %v1078, 0.0
        %v1143 = vmax.f32 %v1079, 0.0
        %v1144 = vmax.f32 %v1080, 0.0
        %v1145 = vmax.f32 %v1081, 0.0
        %v1146 = vmax.f32 %v1082, 0.0
        %v1147 = vmax.f32 %v1083, 0.0
        %v1148 = vmax.f32 %v1084, 0.0
        %v1149 = vmax.f32 %v1085, 0.0
        %v1150 = vmax.f32 %v1086, 0.0
        %v1151 = vmax.f32 %v1087, 0.0
        %v1152 = vmax.f32 %v1088, 0.0
        %v1153 = vmax.f32 %v1089, 0.0
        %v1154 = vmax.f32 %v1090, 0.0
        %v1155 = vmax.f32 %v1091, 0.0
        %v1156 = vmax.f32 %v1092, 0.0
        %v1157 = vmax.f32 %v1093, 0.0
        %v1158 = vmax.f32 %v1094, 0.0
        %v1159 = vmax.f32 %v1095, 0.0
        %v1160 = vmax.f32 %v1096, 0.0
        %v1161 = vmax.f32 %v1097, 0.0
        %v1162 = vmax.f32 %v1098, 0.0
        %v1163 = vmax.f32 %v1099, 0.0
        %v1164 = vmax.f32 %v1100, 0.0
        %v1165 = vmax.f32 %v1101, 0.0
        %v1166 = vmax.f32 %v1102, 0.0
        %v1167 = vmax.f32 %v1103, 0.0
        %v1168 = vmax.f32 %v1104, 0.0
        %v1169 = vmax.f32 %v1105, 0.0
        %v1170 = vmax.f32 %v1106, 0.0
        %v1171 = vmax.f32 %v1107, 0.0
        %v1172 = vmax.f32 %v1108, 0.0
        %v1173 = vmax.f32 %v1109, 0.0
        %v1174 = vmax.f32 %v1110, 0.0
        %v1175 = vmax.f32 %v1111, 0.0
        %v1176 = vmax.f32 %v1112, 0.0
        %v1177 = vmax.f32 %v1113, 0.0
        %v1178 = vmax.f32 %v1114, 0.0
        %v1179 = vmax.f32 %v1115, 0.0
        %v1180 = vmax.f32 %v1116, 0.0
        %v1181 = vmax.f32 %v1117, 0.0
        %v1182 = vmax.f32 %v1118, 0.0
        %v1183 = vmax.f32 %v1119, 0.0
        %v1184 = vmax.f32 %v1120, 0.0
        %v1185 = vmax.f32 %v1121, 0.0
        %v1186 = vmax.f32 %v1122, 0.0
        %v1187 = vmax.f32 %v1123, 0.0
        %v1188 = vmax.f32 %v1124, 0.0
        %v1189 = vmax.f32 %v1125, 0.0
        %v1190 = vmax.f32 %v1126, 0.0
        %v1191 = vmax.f32 %v1127, 0.0
        %v1192 = vmax.f32 %v1128, 0.0
        %v1193 = vmax.f32 %v1129, 0.0
        %v1194 = vmax.f32 %v1130, 0.0
        %1195 = vst [vmem:[%s215] sm:$0xff] %v1131
        %1196 = vst [vmem:[%s215 + $0x8] sm:$0xff] %v1132
        %1197 = vst [vmem:[%s215 + $0x10] sm:$0xff] %v1133
        %1198 = vst [vmem:[%s215 + $0x18] sm:$0xff] %v1134
        %1199 = vst [vmem:[%s215 + $0x20] sm:$0xff] %v1135
        %1200 = vst [vmem:[%s215 + $0x28] sm:$0xff] %v1136
        %1201 = vst [vmem:[%s215 + $0x30] sm:$0xff] %v1137
        %1202 = vst [vmem:[%s215 + $0x38] sm:$0xff] %v1138
        %1203 = vst [vmem:[%s215 + $0x40] sm:$0xff] %v1139
        %1204 = vst [vmem:[%s215 + $0x48] sm:$0xff] %v1140
        %1205 = vst [vmem:[%s215 + $0x50] sm:$0xff] %v1141
        %1206 = vst [vmem:[%s215 + $0x58] sm:$0xff] %v1142
        %1207 = vst [vmem:[%s215 + $0x60] sm:$0xff] %v1143
        %1208 = vst [vmem:[%s215 + $0x68] sm:$0xff] %v1144
        %1209 = vst [vmem:[%s215 + $0x70] sm:$0xff] %v1145
        %1210 = vst [vmem:[%s215 + $0x78] sm:$0xff] %v1146
        %1211 = vst [vmem:[%s215 + $0x80] sm:$0xff] %v1147
        %1212 = vst [vmem:[%s215 + $0x88] sm:$0xff] %v1148
        %1213 = vst [vmem:[%s215 + $0x90] sm:$0xff] %v1149
        %1214 = vst [vmem:[%s215 + $0x98] sm:$0xff] %v1150
        %1215 = vst [vmem:[%s215 + $0xa0] sm:$0xff] %v1151
        %1216 = vst [vmem:[%s215 + $0xa8] sm:$0xff] %v1152
        %1217 = vst [vmem:[%s215 + $0xb0] sm:$0xff] %v1153
        %1218 = vst [vmem:[%s215 + $0xb8] sm:$0xff] %v1154
        %1219 = vst [vmem:[%s215 + $0xc0] sm:$0xff] %v1155
        %1220 = vst [vmem:[%s215 + $0xc8] sm:$0xff] %v1156
        %1221 = vst [vmem:[%s215 + $0xd0] sm:$0xff] %v1157
        %1222 = vst [vmem:[%s215 + $0xd8] sm:$0xff] %v1158
        %1223 = vst [vmem:[%s215 + $0xe0] sm:$0xff] %v1159
        %1224 = vst [vmem:[%s215 + $0xe8] sm:$0xff] %v1160
        %1225 = vst [vmem:[%s215 + $0xf0] sm:$0xff] %v1161
        %1226 = vst [vmem:[%s215 + $0xf8] sm:$0xff] %v1162
        %1227 = vst [vmem:[%s215 + $0x100] sm:$0xff] %v1163
        %1228 = vst [vmem:[%s215 + $0x108] sm:$0xff] %v1164
        %1229 = vst [vmem:[%s215 + $0x110] sm:$0xff] %v1165
        %1230 = vst [vmem:[%s215 + $0x118] sm:$0xff] %v1166
        %1231 = vst [vmem:[%s215 + $0x120] sm:$0xff] %v1167
        %1232 = vst [vmem:[%s215 + $0x128] sm:$0xff] %v1168
        %1233 = vst [vmem:[%s215 + $0x130] sm:$0xff] %v1169
        %1234 = vst [vmem:[%s215 + $0x138] sm:$0xff] %v1170
        %1235 = vst [vmem:[%s215 + $0x140] sm:$0xff] %v1171
        %1236 = vst [vmem:[%s215 + $0x148] sm:$0xff] %v1172
        %1237 = vst [vmem:[%s215 + $0x150] sm:$0xff] %v1173
        %1238 = vst [vmem:[%s215 + $0x158] sm:$0xff] %v1174
        %1239 = vst [vmem:[%s215 + $0x160] sm:$0xff] %v1175
        %1240 = vst [vmem:[%s215 + $0x168] sm:$0xff] %v1176
        %1241 = vst [vmem:[%s215 + $0x170] sm:$0xff] %v1177
        %1242 = vst [vmem:[%s215 + $0x178] sm:$0xff] %v1178
        %1243 = vst [vmem:[%s215 + $0x180] sm:$0xff] %v1179
        %1244 = vst [vmem:[%s215 + $0x188] sm:$0xff] %v1180
        %1245 = vst [vmem:[%s215 + $0x190] sm:$0xff] %v1181
        %1246 = vst [vmem:[%s215 + $0x198] sm:$0xff] %v1182
        %1247 = vst [vmem:[%s215 + $0x1a0] sm:$0xff] %v1183
        %1248 = vst [vmem:[%s215 + $0x1a8] sm:$0xff] %v1184
        %1249 = vst [vmem:[%s215 + $0x1b0] sm:$0xff] %v1185
        %1250 = vst [vmem:[%s215 + $0x1b8] sm:$0xff] %v1186
        %1251 = vst [vmem:[%s215 + $0x1c0] sm:$0xff] %v1187
        %1252 = vst [vmem:[%s215 + $0x1c8] sm:$0xff] %v1188
        %1253 = vst [vmem:[%s215 + $0x1d0] sm:$0xff] %v1189
        %1254 = vst [vmem:[%s215 + $0x1d8] sm:$0xff] %v1190
        %1255 = vst [vmem:[%s215 + $0x1e0] sm:$0xff] %v1191
        %1256 = vst [vmem:[%s215 + $0x1e8] sm:$0xff] %v1192
        %1257 = vst [vmem:[%s215 + $0x1f0] sm:$0xff] %v1193
        %1258 = vst [vmem:[%s215 + $0x1f8] sm:$0xff] %v1194
        %s1259 = sand.u32 %s131, 1
        %s1260 = scalar_lea.sflag [#allocation3], %s1259
        %s1261 = sand.u32 %s131, 1
        %s1262 = smul.addr %s1261, 512
        %s1263 = scalar_lea.vmem [#allocation2], %s1262
        // Predicated region
        $region37: #{tpu_custom_call.1} parent=35 // pred_check
          %p1264 = pneg %p141
        $region38: #{tpu_custom_call.1} parent=35 // pred_check_branch
          %1266 = sbr.rel (%p1264) target = $region40
        $region39: #{tpu_custom_call.1} parent=35 // pred_region
          %s1267 = smul.u32 2, %s23
          %s1269 = ssub.s32 8192, 8192
          %1270 = vsyncadd %s1260, %s1269
          %s1271 = smul.addr %s22, 64
          %s1272 = sadd.s32 %s1267, %s1271
          %s1273 = smul.addr %s1272, 128
          %s1274 = scalar_lea.hbm %s4, %s1273
          %s1275 = sshll.u32 %s1263, 4
          %s1276 = int_to_ptr.vmem [resolvable:$true] %s1275
          %1281 = dma.vmem_to_hbm [thread:$0]  %s1276, 8192, %s1274, %s1260, 256, 256, 16
        $region40: #{tpu_custom_call.1} parent=35 // pred_fallthru
          _
      $region36: #{tpu_custom_call.1} parent=5 // pred_fallthru
        _
      %p1282 = scmp.le.s32.totalorder 2, %s13
      // Predicated region
      $region41: #{tpu_custom_call.1} parent=5 // pred_check
        %p1283 = pneg %p1282
      $region42: #{tpu_custom_call.1} parent=5 // pred_check_branch
        %1285 = sbr.rel (%p1283) target = $region44
      $region43: #{tpu_custom_call.1} parent=5 // pred_region
        %s1286 = ssub.s32 %s13, 2
        // Predicated region
        $region45: #{tpu_custom_call.1} parent=43 // pred_check
          %p1287 = pneg %p147
        $region46: #{tpu_custom_call.1} parent=43 // pred_check_branch
          %1289 = sbr.rel (%p1287) target = $region48
        $region47: #{tpu_custom_call.1} parent=43 // pred_region
          %s1290 = sand.u32 %s132, 1
          %s1291 = scalar_lea.sflag [#allocation3], %s1290
          %s1292 = sand.u32 %s132, 1
          %s1293 = smul.addr %s1292, 512
          %s1294 = scalar_lea.vmem [#allocation2], %s1293
          %1295 = dma.done %s1291, 8192
        $region48: #{tpu_custom_call.1} parent=43 // pred_fallthru
          _
      $region44: #{tpu_custom_call.1} parent=5 // pred_fallthru
        _
    $region6: #{tpu_custom_call.1} parent=1 // loop_footer
      %s17 = sadd.s32 1, %s13
    $region7: #{tpu_custom_call.1} parent=1 // loop_footer_branch
      %12 = sbr.rel target = $region3
    $region8: #{tpu_custom_call.1} parent=1 // loop_exit
      _
    %1296 = vsyncpa [#allocation3], 1
    %s1297 = scalar_lea.sflag [#allocation3], 1
    %1298 = vsyncpa %s1297, 1

</llo_original>
